<compile_context>
chip_gen: v7x
topology: tpu7x:2x2x1
jax: 0.10.0
libtpu: 0.0.40
codegen_flags: <defaults>
</compile_context>

<pallas_src>
import functools

import jax
import jax.numpy as jnp
from jax.experimental import pallas as pl
from jax.experimental.pallas import tpu as pltpu

LOG_STD_MAX = 2.0
LOG_STD_MIN = -5.0


def _round_up(x: int, m: int) -> int:
    return ((x + m - 1) // m) * m


def _cdiv(a: int, b: int) -> int:
    return (a + b - 1) // b


def _make_actor_kernel(n_hidden_layers: int, action_dim: int):
    """relu(Linear) x (1 + n_hidden_layers) -> fused, lane-padded mean/logstd head."""

    def kernel(x_ref, w0_ref, b0_ref, *rest):
        if n_hidden_layers > 0:
            wh_ref, bh_ref, whead_ref, bhead_ref, out_ref = rest
        else:
            whead_ref, bhead_ref, out_ref = rest
            wh_ref = bh_ref = None

        # blocks[0]: Linear(input_dim, hidden) + relu   (bf16 x bf16 -> f32 acc)
        x = x_ref[...]                                             # (tile_b, in) bf16
        h = jnp.dot(x, w0_ref[...], preferred_element_type=jnp.float32)
        h = jnp.maximum(h + b0_ref[...], 0.0)                      # f32

        # blocks[1..N]: Linear(hidden, hidden) + relu (stacked weights)
        for i in range(n_hidden_layers):
            h = jnp.dot(h.astype(jnp.bfloat16), wh_ref[i],
                        preferred_element_type=jnp.float32)
            h = jnp.maximum(h + bh_ref[i], 0.0)

        # TODO(synk): `train_only_last_layer` detach() is autograd-only; nothing
        # to translate in a forward pass.

        # Fused, 128-lane-padded head: cols [0:A)=mean, [A:2A)=log_std, rest pad.
        head = jnp.dot(h.astype(jnp.bfloat16), whead_ref[...],
                       preferred_element_type=jnp.float32) + bhead_ref[...]

        squashed = LOG_STD_MIN + 0.5 * (LOG_STD_MAX - LOG_STD_MIN) * (jnp.tanh(head) + 1.0)
        col = jax.lax.broadcasted_iota(jnp.int32, head.shape, 1)
        out_ref[...] = jnp.where(col < action_dim, head, squashed).astype(out_ref.dtype)

    return kernel


def _resident_spec(shape):
    """Parameter pinned in VMEM across all batch tiles; single-buffered."""
    ndim = len(shape)
    index_map = lambda i, _n=ndim: (0,) * _n
    try:
        return pl.BlockSpec(shape, index_map, pipeline_mode=pl.Buffered(1))
    except TypeError:  # older BlockSpec without pipeline_mode
        return pl.BlockSpec(shape, index_map)


def _choose_tile_b(batch: int) -> int:
    # Small/medium batch: one full-dim tile (always layout-legal, no padding).
    # Large batch: balanced tiles, 256-aligned (fills the v6e/v7x 256-wide MXU,
    # 2x128 passes on v5e, and satisfies bf16 sublane packing).
    if batch <= 512:
        return batch
    n_tiles = _cdiv(batch, 512)
    return _round_up(_cdiv(batch, n_tiles), 256)


def actor_forward(obs, params, n_hidden_layers, action_dim):
    """Returns (mean, log_std), matching Actor.forward."""
    batch, input_dim = obs.shape
    hidden_dim = params["w0"].shape[1]
    head_pad = params["w_head"].shape[1]           # 128-lane-padded head width

    obs_bf = obs.astype(jnp.bfloat16)

    tile_b = _choose_tile_b(batch)
    grid = (_cdiv(batch, tile_b),)

    inputs = [obs_bf, params["w0"], params["b0"]]
    in_specs = [
        pl.BlockSpec((tile_b, input_dim), lambda i: (i, 0)),
        _resident_spec(params["w0"].shape),
        _resident_spec(params["b0"].shape),
    ]
    if n_hidden_layers > 0:
        inputs += [params["wh"], params["bh"]]
        in_specs += [_resident_spec(params["wh"].shape),
                     _resident_spec(params["bh"].shape)]
    inputs += [params["w_head"], params["b_head"]]
    in_specs += [_resident_spec(params["w_head"].shape),
                 _resident_spec(params["b_head"].shape)]

    out_shape = jax.ShapeDtypeStruct((batch, head_pad), jnp.float32)
    out_spec = pl.BlockSpec((tile_b, head_pad), lambda i: (i, 0))

    # VMEM budget (per TensorCore): resident params (x2 in case the
    # single-buffer hint is unavailable) + double-buffered obs/out tiles +
    # headroom, clamped to <=48 MiB (safe on v7x's 64 MiB/TC, a raise over the
    # 16/32 MiB scoped defaults on v5e/v6e).
    param_bytes = sum(int(p.size) * p.dtype.itemsize for p in inputs[1:])
    stream_bytes = 2 * (tile_b * input_dim * 2 + tile_b * head_pad * 4)
    vmem_limit = int(min(max(2 * param_bytes + stream_bytes + (4 << 20), 16 << 20),
                         48 << 20))

    flops = 2 * batch * (input_dim * hidden_dim
                         + n_hidden_layers * hidden_dim * hidden_dim
                         + hidden_dim * head_pad)
    bytes_accessed = int(obs_bf.size) * 2 + param_bytes + batch * head_pad * 4
    cost = pl.CostEstimate(flops=flops,
                           transcendentals=batch * head_pad,
                           bytes_accessed=bytes_accessed)

    out = pl.pallas_call(
        _make_actor_kernel(n_hidden_layers, action_dim),
        out_shape=out_shape,
        grid=grid,
        in_specs=in_specs,
        out_specs=out_spec,
        compiler_params=pltpu.CompilerParams(
            dimension_semantics=("parallel",),   # megacore split across batch tiles
            vmem_limit_bytes=vmem_limit,
        ),
        cost_estimate=cost,
    )(*inputs)

    return out[:, :action_dim], out[:, action_dim:2 * action_dim]


def init_params(key, input_dim, hidden_dim, action_dim, n_hidden_layers):
    """Synthetic init. Weights stored (in, out) in bf16; biases in f32; hidden
    layers stacked; fc_mean/fc_logstd packed into one 128-lane-padded head."""
    params = {}
    k = key

    def nxt():
        nonlocal k
        k, sub = jax.random.split(k)
        return sub

    scale = 0.1
    head_pad = max(128, _round_up(2 * action_dim, 128))

    params["w0"] = (scale * jax.random.normal(
        nxt(), (input_dim, hidden_dim), jnp.float32)).astype(jnp.bfloat16)
    params["b0"] = scale * jax.random.normal(nxt(), (1, hidden_dim), jnp.float32)
    if n_hidden_layers > 0:
        params["wh"] = (scale * jax.random.normal(
            nxt(), (n_hidden_layers, hidden_dim, hidden_dim), jnp.float32)).astype(jnp.bfloat16)
        params["bh"] = scale * jax.random.normal(
            nxt(), (n_hidden_layers, 1, hidden_dim), jnp.float32)

    w_mean = scale * jax.random.normal(nxt(), (hidden_dim, action_dim), jnp.float32)
    w_ls = scale * jax.random.normal(nxt(), (hidden_dim, action_dim), jnp.float32)
    b_mean = scale * jax.random.normal(nxt(), (1, action_dim), jnp.float32)
    b_ls = scale * jax.random.normal(nxt(), (1, action_dim), jnp.float32)

    w_head = jnp.zeros((hidden_dim, head_pad), jnp.float32)
    w_head = w_head.at[:, :action_dim].set(w_mean)
    w_head = w_head.at[:, action_dim:2 * action_dim].set(w_ls)
    b_head = jnp.zeros((1, head_pad), jnp.float32)
    b_head = b_head.at[:, :action_dim].set(b_mean)
    b_head = b_head.at[:, action_dim:2 * action_dim].set(b_ls)

    params["w_head"] = w_head.astype(jnp.bfloat16)
    params["b_head"] = b_head
    return params


def reference_forward(obs, params, n_hidden_layers, action_dim):
    """Pure-JAX reference mirroring PyTorch Actor.forward (f32 math on the
    bf16-rounded weights)."""
    h = obs.astype(jnp.bfloat16).astype(jnp.float32)
    h = jnp.maximum(h @ params["w0"].astype(jnp.float32) + params["b0"], 0.0)
    for i in range(n_hidden_layers):
        h = jnp.maximum(h @ params["wh"][i].astype(jnp.float32) + params["bh"][i], 0.0)
    w_head = params["w_head"].astype(jnp.float32)[:, :2 * action_dim]
    b_head = params["b_head"][:, :2 * action_dim]
    head = h @ w_head + b_head
    mean = head[:, :action_dim]
    ls = jnp.tanh(head[:, action_dim:])
    ls = LOG_STD_MIN + 0.5 * (LOG_STD_MAX - LOG_STD_MIN) * (ls + 1.0)
    return mean, ls


if __name__ == "__main__":
    # Small synthetic config consistent with the module:
    #   env.single_observation_space.shape -> (16,) => input_dim = 16
    #   args.actor_hidden_dim = 32, args.N_hidden_layers = 2
    #   env.single_action_space.shape -> (4,)       => action_dim = 4
    # NOTE: at this toy size the call is dominated by fixed pallas_call/DMA
    # overhead; the tiling/bf16/lane-padding design pays off at real batch and
    # hidden sizes (grid > 1 step, resident weights reused across tiles).
    batch = 8
    input_dim = 16
    hidden_dim = 32
    action_dim = 4
    n_hidden_layers = 2

    key = jax.random.PRNGKey(0)
    key, obs_key = jax.random.split(key)
    obs = jax.random.normal(obs_key, (batch, input_dim), jnp.float32)

    params = init_params(key, input_dim, hidden_dim, action_dim, n_hidden_layers)

    fwd = jax.jit(functools.partial(actor_forward,
                                    n_hidden_layers=n_hidden_layers,
                                    action_dim=action_dim))
    mean, log_std = fwd(obs, params)
    jax.block_until_ready((mean, log_std))

    ref_mean, ref_log_std = reference_forward(obs, params, n_hidden_layers, action_dim)
    assert mean.shape == (batch, action_dim) and log_std.shape == (batch, action_dim)
    # bf16 activations/weights with f32 accumulation -> loosened tolerance.
    assert jnp.allclose(mean, ref_mean, atol=2e-2, rtol=2e-2), \
        float(jnp.max(jnp.abs(mean - ref_mean)))
    assert jnp.allclose(log_std, ref_log_std, atol=2e-2, rtol=2e-2), \
        float(jnp.max(jnp.abs(log_std - ref_log_std)))

    print("KERNEL_OK")
</pallas_src>

<mosaic_0001>
module attributes {stable_mosaic.version = 11 : i64} {
  func.func @kernel(%arg0: i32, %arg1: memref<8x16xbf16, #tpu.memory_space<vmem>>, %arg2: memref<16x32xbf16, #tpu.memory_space<vmem>>, %arg3: memref<1x32xf32, #tpu.memory_space<vmem>>, %arg4: memref<2x32x32xbf16, #tpu.memory_space<vmem>>, %arg5: memref<2x1x32xf32, #tpu.memory_space<vmem>>, %arg6: memref<32x128xbf16, #tpu.memory_space<vmem>>, %arg7: memref<1x128xf32, #tpu.memory_space<vmem>>, %arg8: memref<8x128xf32, #tpu.memory_space<vmem>>) attributes {dimension_semantics = [#tpu.dimension_semantics<parallel>], iteration_bounds = array<i64: 1>, scalar_prefetch = 0 : i64, scratch_operands = 0 : i64, tpu.core_type = #tpu.core_type<tc>, window_params = [{transform_indices = @transform_0, window_bounds = array<i64: 8, 16>}, {pipeline_mode = #tpu.pipeline_mode<synchronous>, transform_indices = @transform_1, window_bounds = array<i64: 16, 32>}, {pipeline_mode = #tpu.pipeline_mode<synchronous>, transform_indices = @transform_2, window_bounds = array<i64: 1, 32>}, {pipeline_mode = #tpu.pipeline_mode<synchronous>, transform_indices = @transform_3, window_bounds = array<i64: 2, 32, 32>}, {pipeline_mode = #tpu.pipeline_mode<synchronous>, transform_indices = @transform_4, window_bounds = array<i64: 2, 1, 32>}, {pipeline_mode = #tpu.pipeline_mode<synchronous>, transform_indices = @transform_5, window_bounds = array<i64: 32, 128>}, {pipeline_mode = #tpu.pipeline_mode<synchronous>, transform_indices = @transform_6, window_bounds = array<i64: 1, 128>}, {transform_indices = @transform_7, window_bounds = array<i64: 8, 128>}]} {
    %c0 = arith.constant 0 : index
    %c0_0 = arith.constant 0 : index
    %0 = vector.load %arg1[%c0, %c0_0] : memref<8x16xbf16, #tpu.memory_space<vmem>>, vector<8x16xbf16>
    %c0_1 = arith.constant 0 : index
    %c0_2 = arith.constant 0 : index
    %1 = vector.load %arg2[%c0_1, %c0_2] : memref<16x32xbf16, #tpu.memory_space<vmem>>, vector<16x32xbf16>
    %cst = arith.constant dense<0.000000e+00> : vector<8x32xf32>
    %2 = tpu.matmul %0, %1, %cst {dimension_numbers = #tpu.dot_dimension_numbers<[1], [0], [0], [1], [0, 0, 1, 1], [], []>} : vector<8x16xbf16>, vector<16x32xbf16>, vector<8x32xf32> -> vector<8x32xf32>
    %c0_3 = arith.constant 0 : index
    %c0_4 = arith.constant 0 : index
    %3 = vector.load %arg3[%c0_3, %c0_4] : memref<1x32xf32, #tpu.memory_space<vmem>>, vector<1x32xf32>
    %4 = vector.broadcast %3 : vector<1x32xf32> to vector<8x32xf32>
    %5 = arith.addf %2, %4 : vector<8x32xf32>
    %cst_5 = arith.constant 0.000000e+00 : f32
    %6 = vector.broadcast %cst_5 : f32 to vector<8x32xf32>
    %7 = arith.maximumf %5, %6 : vector<8x32xf32>
    %8 = arith.truncf %7 : vector<8x32xf32> to vector<8x32xbf16>
    %c0_6 = arith.constant 0 : index
    %c0_7 = arith.constant 0 : index
    %c0_8 = arith.constant 0 : index
    %9 = vector.load %arg4[%c0_6, %c0_7, %c0_8] : memref<2x32x32xbf16, #tpu.memory_space<vmem>>, vector<1x32x32xbf16>
    %10 = vector.shape_cast %9 : vector<1x32x32xbf16> to vector<32x32xbf16>
    %cst_9 = arith.constant dense<0.000000e+00> : vector<8x32xf32>
    %11 = tpu.matmul %8, %10, %cst_9 {dimension_numbers = #tpu.dot_dimension_numbers<[1], [0], [0], [1], [0, 0, 1, 1], [], []>} : vector<8x32xbf16>, vector<32x32xbf16>, vector<8x32xf32> -> vector<8x32xf32>
    %c0_10 = arith.constant 0 : index
    %c0_11 = arith.constant 0 : index
    %c0_12 = arith.constant 0 : index
    %12 = vector.load %arg5[%c0_10, %c0_11, %c0_12] : memref<2x1x32xf32, #tpu.memory_space<vmem>>, vector<1x1x32xf32>
    %13 = vector.shape_cast %12 : vector<1x1x32xf32> to vector<1x32xf32>
    %14 = vector.broadcast %13 : vector<1x32xf32> to vector<8x32xf32>
    %15 = arith.addf %11, %14 : vector<8x32xf32>
    %cst_13 = arith.constant 0.000000e+00 : f32
    %16 = vector.broadcast %cst_13 : f32 to vector<8x32xf32>
    %17 = arith.maximumf %15, %16 : vector<8x32xf32>
    %18 = arith.truncf %17 : vector<8x32xf32> to vector<8x32xbf16>
    %c1 = arith.constant 1 : index
    %c0_14 = arith.constant 0 : index
    %c0_15 = arith.constant 0 : index
    %19 = vector.load %arg4[%c1, %c0_14, %c0_15] : memref<2x32x32xbf16, #tpu.memory_space<vmem>>, vector<1x32x32xbf16>
    %20 = vector.shape_cast %19 : vector<1x32x32xbf16> to vector<32x32xbf16>
    %cst_16 = arith.constant dense<0.000000e+00> : vector<8x32xf32>
    %21 = tpu.matmul %18, %20, %cst_16 {dimension_numbers = #tpu.dot_dimension_numbers<[1], [0], [0], [1], [0, 0, 1, 1], [], []>} : vector<8x32xbf16>, vector<32x32xbf16>, vector<8x32xf32> -> vector<8x32xf32>
    %c1_17 = arith.constant 1 : index
    %c0_18 = arith.constant 0 : index
    %c0_19 = arith.constant 0 : index
    %22 = vector.load %arg5[%c1_17, %c0_18, %c0_19] : memref<2x1x32xf32, #tpu.memory_space<vmem>>, vector<1x1x32xf32>
    %23 = vector.shape_cast %22 : vector<1x1x32xf32> to vector<1x32xf32>
    %24 = vector.broadcast %23 : vector<1x32xf32> to vector<8x32xf32>
    %25 = arith.addf %21, %24 : vector<8x32xf32>
    %cst_20 = arith.constant 0.000000e+00 : f32
    %26 = vector.broadcast %cst_20 : f32 to vector<8x32xf32>
    %27 = arith.maximumf %25, %26 : vector<8x32xf32>
    %28 = arith.truncf %27 : vector<8x32xf32> to vector<8x32xbf16>
    %c0_21 = arith.constant 0 : index
    %c0_22 = arith.constant 0 : index
    %29 = vector.load %arg6[%c0_21, %c0_22] : memref<32x128xbf16, #tpu.memory_space<vmem>>, vector<32x128xbf16>
    %cst_23 = arith.constant dense<0.000000e+00> : vector<8x128xf32>
    %30 = tpu.matmul %28, %29, %cst_23 {dimension_numbers = #tpu.dot_dimension_numbers<[1], [0], [0], [1], [0, 0, 1, 1], [], []>} : vector<8x32xbf16>, vector<32x128xbf16>, vector<8x128xf32> -> vector<8x128xf32>
    %c0_24 = arith.constant 0 : index
    %c0_25 = arith.constant 0 : index
    %31 = vector.load %arg7[%c0_24, %c0_25] : memref<1x128xf32, #tpu.memory_space<vmem>>, vector<1x128xf32>
    %32 = vector.broadcast %31 : vector<1x128xf32> to vector<8x128xf32>
    %33 = arith.addf %30, %32 : vector<8x128xf32>
    %34 = math.tanh %33 : vector<8x128xf32>
    %cst_26 = arith.constant 1.000000e+00 : f32
    %35 = vector.broadcast %cst_26 : f32 to vector<8x128xf32>
    %36 = arith.addf %34, %35 : vector<8x128xf32>
    %cst_27 = arith.constant 3.500000e+00 : f32
    %37 = vector.broadcast %cst_27 : f32 to vector<8x128xf32>
    %38 = arith.mulf %37, %36 : vector<8x128xf32>
    %cst_28 = arith.constant -5.000000e+00 : f32
    %39 = vector.broadcast %cst_28 : f32 to vector<8x128xf32>
    %40 = arith.addf %39, %38 : vector<8x128xf32>
    %41 = tpu.iota {dimensions = array<i32: 1>} : vector<8x128xi32>
    %c4_i32 = arith.constant 4 : i32
    %42 = vector.broadcast %c4_i32 : i32 to vector<8x128xi32>
    %43 = arith.cmpi slt, %41, %42 : vector<8x128xi32>
    %44 = arith.select %43, %33, %40 : vector<8x128xi1>, vector<8x128xf32>
    %c0_29 = arith.constant 0 : index
    %c0_30 = arith.constant 0 : index
    %45 = vector.load %arg8[%c0_29, %c0_30] : memref<8x128xf32, #tpu.memory_space<vmem>>, vector<8x128xf32>
    tpu.vector_store %arg8[%c0_29, %c0_30], %44 {strides = array<i32>} : memref<8x128xf32, #tpu.memory_space<vmem>>, vector<8x128xf32>,
    return
  }
  func.func @transform_0(%arg0: i32) -> (i32, i32) {
    %c0_i32 = arith.constant 0 : i32
    %c0_i32_0 = arith.constant 0 : i32
    return %arg0, %c0_i32 : i32, i32
  }
  func.func @transform_1(%arg0: i32) -> (i32, i32) {
    %c0_i32 = arith.constant 0 : i32
    %c0_i32_0 = arith.constant 0 : i32
    %c0_i32_1 = arith.constant 0 : i32
    return %c0_i32, %c0_i32_0 : i32, i32
  }
  func.func @transform_2(%arg0: i32) -> (i32, i32) {
    %c0_i32 = arith.constant 0 : i32
    %c0_i32_0 = arith.constant 0 : i32
    %c0_i32_1 = arith.constant 0 : i32
    return %c0_i32, %c0_i32_0 : i32, i32
  }
  func.func @transform_3(%arg0: i32) -> (i32, i32, i32) {
    %c0_i32 = arith.constant 0 : i32
    %c0_i32_0 = arith.constant 0 : i32
    %c0_i32_1 = arith.constant 0 : i32
    %c0_i32_2 = arith.constant 0 : i32
    return %c0_i32, %c0_i32_0, %c0_i32_1 : i32, i32, i32
  }
  func.func @transform_4(%arg0: i32) -> (i32, i32, i32) {
    %c0_i32 = arith.constant 0 : i32
    %c0_i32_0 = arith.constant 0 : i32
    %c0_i32_1 = arith.constant 0 : i32
    %c0_i32_2 = arith.constant 0 : i32
    return %c0_i32, %c0_i32_0, %c0_i32_1 : i32, i32, i32
  }
  func.func @transform_5(%arg0: i32) -> (i32, i32) {
    %c0_i32 = arith.constant 0 : i32
    %c0_i32_0 = arith.constant 0 : i32
    %c0_i32_1 = arith.constant 0 : i32
    return %c0_i32, %c0_i32_0 : i32, i32
  }
  func.func @transform_6(%arg0: i32) -> (i32, i32) {
    %c0_i32 = arith.constant 0 : i32
    %c0_i32_0 = arith.constant 0 : i32
    %c0_i32_1 = arith.constant 0 : i32
    return %c0_i32, %c0_i32_0 : i32, i32
  }
  func.func @transform_7(%arg0: i32) -> (i32, i32) {
    %c0_i32 = arith.constant 0 : i32
    %c0_i32_0 = arith.constant 0 : i32
    return %arg0, %c0_i32 : i32, i32
  }
}

</mosaic_0001>

<llo_original>
// kernel: actor_forward.1
$region0: #{actor_forward.1}
  #allocation0 [shape = 'u32[]', space=smem, size = 0x4, offset = 0x4, fixed_abs, tag = 'smem constant byte address 0x4 - core index']
  #allocation1 [shape = 'u32[144,128]{1,0:T(1,128)}', space=vmem, size = 0x12000, scoped, tag = 'internal scratch']
  %s0 = inlined_call_operand.vmem [shape: bf16[8,16], index: 0, kind: input, shape index: {}]
  %s1 = inlined_call_operand.hbm [shape: bf16[16,32], index: 1, kind: input, shape index: {}]
  %s2 = inlined_call_operand.hbm [shape: f32[1,32], index: 2, kind: input, shape index: {}]
  %s3 = inlined_call_operand.vmem [shape: bf16[2,32,32], index: 3, kind: input, shape index: {}]
  %s4 = inlined_call_operand.vmem [shape: f32[2,1,32], index: 4, kind: input, shape index: {}]
  %s5 = inlined_call_operand.hbm [shape: bf16[32,128], index: 5, kind: input, shape index: {}]
  %s6 = inlined_call_operand.hbm [shape: f32[1,128], index: 6, kind: input, shape index: {}]
  %s7 = inlined_call_operand.vmem [shape: f32[8,128], index: 7, kind: output, shape index: {}]
  %s8 = sld [smem:[#allocation0]]
  $region54: #{actor_forward.1} parent=0
    _
  %s10 = ssub.s32 1, %s8
  %s11 = scalar_select 0, %s10, %s8
  $region1: #{actor_forward.1} parent=0
    #allocation2 [shape = 'u8[4096]{0}', space=vmem, size = 0x1000, scoped, tag = 'input window, operand 1, single buffered']
    #allocation3 [shape = 's32[1]{0}', space=sflag, size = 0x4, scoped, tag = 'scoped memory for actor_forward.1']
    #allocation4 [shape = 'u8[512]{0}', space=vmem, size = 0x400, scoped, tag = 'input window, operand 2, single buffered']
    #allocation5 [shape = 's32[1]{0}', space=sflag, size = 0x4, scoped, tag = 'scoped memory for actor_forward.1']
    #allocation6 [shape = 'u8[8192]{0}', space=vmem, size = 0x2000, scoped, tag = 'input window, operand 5, single buffered']
    #allocation7 [shape = 'u8[512]{0}', space=vmem, size = 0x400, scoped, tag = 'input window, operand 6, single buffered']
    #allocation8 [shape = 's32[1]{0}', space=sflag, size = 0x4, scoped, tag = 'scoped memory for actor_forward.1']
    %12 = vsyncpa [#allocation3], 0
    %13 = vsyncpa [#allocation5], 0
    %14 = vsyncpa [#allocation8], 0
    // Predicated region
    $region2: #{actor_forward.1} parent=1 // pred_check
      _
    $region3: #{actor_forward.1} parent=1 // pred_check_branch
      %16 = sbr.rel (0) target = $region5
    $region4: #{actor_forward.1} parent=1 // pred_region
      _
    $region5: #{actor_forward.1} parent=1 // pred_fallthru
      _
    // Predicated region
    $region6: #{actor_forward.1} parent=1 // pred_check
      _
    $region7: #{actor_forward.1} parent=1 // pred_check_branch
      %18 = sbr.rel (0) target = $region9
    $region8: #{actor_forward.1} parent=1 // pred_region
      %s20 = ssub.s32 128, 128
      %21 = vsyncadd [#allocation3], %s20
      %s22 = sshll.u32 [#allocation2], 4
      %s23 = int_to_ptr.vmem [resolvable:$true] %s22
      %28 = dma.hbm_to_vmem [thread:$0]  %s1, 128, %s23, [#allocation3], 64, 64, 4
    $region9: #{actor_forward.1} parent=1 // pred_fallthru
      _
    // Predicated region
    $region10: #{actor_forward.1} parent=1 // pred_check
      _
    $region11: #{actor_forward.1} parent=1 // pred_check_branch
      %30 = sbr.rel (0) target = $region13
    $region12: #{actor_forward.1} parent=1 // pred_region
      %s32 = ssub.s32 16, 16
      %33 = vsyncadd [#allocation5], %s32
      %s35 = sshll.u32 [#allocation4], 4
      %s36 = int_to_ptr.vmem [resolvable:$true] %s35
      %38 = dma.hbm_to_vmem [thread:$0]  %s2, 16, %s36, [#allocation5]
    $region13: #{actor_forward.1} parent=1 // pred_fallthru
      _
    // Predicated region
    $region14: #{actor_forward.1} parent=1 // pred_check
      _
    $region15: #{actor_forward.1} parent=1 // pred_check_branch
      %40 = sbr.rel (0) target = $region17
    $region16: #{actor_forward.1} parent=1 // pred_region
      _
    $region17: #{actor_forward.1} parent=1 // pred_fallthru
      _
    // Predicated region
    $region18: #{actor_forward.1} parent=1 // pred_check
      _
    $region19: #{actor_forward.1} parent=1 // pred_check_branch
      %42 = sbr.rel (0) target = $region21
    $region20: #{actor_forward.1} parent=1 // pred_region
      _
    $region21: #{actor_forward.1} parent=1 // pred_fallthru
      _
    // Predicated region
    $region22: #{actor_forward.1} parent=1 // pred_check
      _
    $region23: #{actor_forward.1} parent=1 // pred_check_branch
      %44 = sbr.rel (0) target = $region25
    $region24: #{actor_forward.1} parent=1 // pred_region
      %s46 = ssub.s32 256, 256
      %47 = vsyncadd [#allocation5], %s46
      %s48 = sshll.u32 [#allocation6], 4
      %s49 = int_to_ptr.vmem [resolvable:$true] %s48
      %54 = dma.hbm_to_vmem [thread:$0]  %s5, 256, %s49, [#allocation5], 64, 64, 4
    $region25: #{actor_forward.1} parent=1 // pred_fallthru
      _
    // Predicated region
    $region26: #{actor_forward.1} parent=1 // pred_check
      _
    $region27: #{actor_forward.1} parent=1 // pred_check_branch
      %56 = sbr.rel (0) target = $region29
    $region28: #{actor_forward.1} parent=1 // pred_region
      %s58 = ssub.s32 16, 16
      %59 = vsyncadd [#allocation8], %s58
      %s61 = sshll.u32 [#allocation7], 4
      %s62 = int_to_ptr.vmem [resolvable:$true] %s61
      %64 = dma.hbm_to_vmem [thread:$0]  %s6, 16, %s62, [#allocation8]
    $region29: #{actor_forward.1} parent=1 // pred_fallthru
      _
    // Predicated region
    $region30: #{actor_forward.1} parent=1 // pred_check
      _
    $region31: #{actor_forward.1} parent=1 // pred_check_branch
      %66 = sbr.rel (0) target = $region33
    $region32: #{actor_forward.1} parent=1 // pred_region
      %67 = dma.done [#allocation3], 128
    $region33: #{actor_forward.1} parent=1 // pred_fallthru
      _
    // Predicated region
    $region34: #{actor_forward.1} parent=1 // pred_check
      _
    $region35: #{actor_forward.1} parent=1 // pred_check_branch
      %69 = sbr.rel (0) target = $region37
    $region36: #{actor_forward.1} parent=1 // pred_region
      %70 = dma.done [#allocation5], 16
    $region37: #{actor_forward.1} parent=1 // pred_fallthru
      _
    // Predicated region
    $region38: #{actor_forward.1} parent=1 // pred_check
      _
    $region39: #{actor_forward.1} parent=1 // pred_check_branch
      %72 = sbr.rel (0) target = $region41
    $region40: #{actor_forward.1} parent=1 // pred_region
      %73 = dma.done [#allocation5], 256
    $region41: #{actor_forward.1} parent=1 // pred_fallthru
      _
    // Predicated region
    $region42: #{actor_forward.1} parent=1 // pred_check
      _
    $region43: #{actor_forward.1} parent=1 // pred_check_branch
      %75 = sbr.rel (0) target = $region45
    $region44: #{actor_forward.1} parent=1 // pred_region
      %76 = dma.done [#allocation8], 16
    $region45: #{actor_forward.1} parent=1 // pred_fallthru
      _
    %v78 = vld [vmem:[%s0] sm:$0xf]
    %v79 = vld [vmem:[#allocation2] sm:$0xf]
    %v80 = vld [vmem:[#allocation2 + $0x4] sm:$0xf]
    %v81 = vld [vmem:[#allocation4] sm:$0x1]
    %v83 = vlaneseq
    %v84 = vshrl.u32 %v83, 7
    %v85 = vsub.s32 0, %v84
    %v86 = vrot.slane %v81, %v85
    %v90 = vunpack.c.l.b16 %v79
    %v91 = vunpack.c.l.b16 %v80
    %v92 = vpack.c.b16 %v91, %v90
    %vm94 = vcmask 130048
    %v96 = vsel %vm94, %v78, 0
    %98 = vmatprep.subr.bf16.mxu0 0
    %99 = vmatpush1.bf16.msra.mxu0 %v92
    %100 = vmatprep.subr.bf16.mxu0 0
    %101 = vmatpush1.bf16.msra.mxu0 0
    %102 = vmatprep.subr.bf16.mxu0 0
    %103 = vmatpush1.bf16.msra.mxu0 0
    %104 = vmatprep.subr.bf16.mxu0 0
    %105 = vmatpush1.bf16.msra.mxu0 0
    %106 = vmatprep.subr.bf16.mxu0 0
    %107 = vmatpush1.bf16.msra.mxu0 0
    %108 = vmatprep.subr.bf16.mxu0 0
    %109 = vmatpush1.bf16.msra.mxu0 0
    %110 = vmatprep.subr.bf16.mxu0 0
    %111 = vmatpush1.bf16.msra.mxu0 0
    %112 = vmatprep.subr.bf16.mxu0 0
    %113 = vmatpush1.bf16.msra.mxu0 0
    %114 = vmatprep.subr.bf16.mxu0 0
    %115 = vmatpush1.bf16.msra.mxu0 0
    %116 = vmatprep.subr.bf16.mxu0 0
    %117 = vmatpush1.bf16.msra.mxu0 0
    %118 = vmatprep.subr.bf16.mxu0 0
    %119 = vmatpush1.bf16.msra.mxu0 0
    %120 = vmatprep.subr.bf16.mxu0 0
    %121 = vmatpush1.bf16.msra.mxu0 0
    %122 = vmatprep.subr.bf16.mxu0 0
    %123 = vmatpush1.bf16.msra.mxu0 0
    %124 = vmatprep.subr.bf16.mxu0 0
    %125 = vmatpush1.bf16.msra.mxu0 0
    %126 = vmatprep.subr.bf16.mxu0 0
    %127 = vmatpush1.bf16.msra.mxu0 0
    %128 = vmatprep.subr.bf16.mxu0 0
    %129 = vmatpush1.bf16.msra.mxu0 0
    %130 = vmatprep.mubr.bf16.mxu0 0
    %131 = vmatmul.mubr.bf16.gmra.mrb[0].mxu0 %v96
    %v132 = vpop.f32.mrb[0].mxu0
    %v133 = vadd.f32 %v86, %v132
    %v134 = vpop.f32.mrb[0].mxu0
    %v135 = vpop.f32.mrb[0].mxu0
    %v136 = vpop.f32.mrb[0].mxu0
    %137 = vdwg.mxu0
    %v138 = vmax.f32 %v133, 0.0
    %v139 = vpack.c.bf16 %v138, %v138
    %v140 = vld [vmem:[%s3] sm:$0xf]
    %v141 = vld [vmem:[%s3 + $0x4] sm:$0xf]
    %v142 = vld [vmem:[%s3 + $0x8] sm:$0xf]
    %v143 = vld [vmem:[%s3 + $0xc] sm:$0xf]
    %v144 = vld [vmem:[%s4] sm:$0x1]
    %v146 = vlaneseq
    %v147 = vshrl.u32 %v146, 7
    %v148 = vsub.s32 0, %v147
    %v149 = vrot.slane %v144, %v148
    %v155 = vunpack.c.l.b16 %v140
    %v156 = vunpack.c.l.b16 %v141
    %v157 = vunpack.c.l.b16 %v142
    %v158 = vunpack.c.l.b16 %v143
    %v159 = vpack.c.b16 %v156, %v155
    %v160 = vpack.c.b16 %v158, %v157
    %vm163 = vcmask 261120
    %v165 = vsel %vm163, %v139, 0
    %167 = vmatprep.subr.bf16.mxu0 0
    %168 = vmatpush1.bf16.msra.mxu0 %v159
    %169 = vmatprep.subr.bf16.mxu0 0
    %170 = vmatpush1.bf16.msra.mxu0 %v160
    %171 = vmatprep.subr.bf16.mxu0 0
    %172 = vmatpush1.bf16.msra.mxu0 0
    %173 = vmatprep.subr.bf16.mxu0 0
    %174 = vmatpush1.bf16.msra.mxu0 0
    %175 = vmatprep.subr.bf16.mxu0 0
    %176 = vmatpush1.bf16.msra.mxu0 0
    %177 = vmatprep.subr.bf16.mxu0 0
    %178 = vmatpush1.bf16.msra.mxu0 0
    %179 = vmatprep.subr.bf16.mxu0 0
    %180 = vmatpush1.bf16.msra.mxu0 0
    %181 = vmatprep.subr.bf16.mxu0 0
    %182 = vmatpush1.bf16.msra.mxu0 0
    %183 = vmatprep.subr.bf16.mxu0 0
    %184 = vmatpush1.bf16.msra.mxu0 0
    %185 = vmatprep.subr.bf16.mxu0 0
    %186 = vmatpush1.bf16.msra.mxu0 0
    %187 = vmatprep.subr.bf16.mxu0 0
    %188 = vmatpush1.bf16.msra.mxu0 0
    %189 = vmatprep.subr.bf16.mxu0 0
    %190 = vmatpush1.bf16.msra.mxu0 0
    %191 = vmatprep.subr.bf16.mxu0 0
    %192 = vmatpush1.bf16.msra.mxu0 0
    %193 = vmatprep.subr.bf16.mxu0 0
    %194 = vmatpush1.bf16.msra.mxu0 0
    %195 = vmatprep.subr.bf16.mxu0 0
    %196 = vmatpush1.bf16.msra.mxu0 0
    %197 = vmatprep.subr.bf16.mxu0 0
    %198 = vmatpush1.bf16.msra.mxu0 0
    %199 = vmatprep.mubr.bf16.mxu0 0
    %200 = vmatmul.mubr.bf16.gmra.mrb[0].mxu0 %v165
    %v201 = vpop.f32.mrb[0].mxu0
    %v202 = vadd.f32 %v149, %v201
    %v203 = vpop.f32.mrb[0].mxu0
    %v204 = vpop.f32.mrb[0].mxu0
    %v205 = vpop.f32.mrb[0].mxu0
    %206 = vdwg.mxu0
    %v207 = vmax.f32 %v202, 0.0
    %v208 = vpack.c.bf16 %v207, %v207
    %s209 = scalar_lea.vmem %s3, 16
    %v210 = vld [vmem:[%s209] sm:$0xf]
    %v211 = vld [vmem:[%s209 + $0x4] sm:$0xf]
    %v212 = vld [vmem:[%s209 + $0x8] sm:$0xf]
    %v213 = vld [vmem:[%s209 + $0xc] sm:$0xf]
    %s214 = scalar_lea.vmem %s4, 1
    %v215 = vld [vmem:[%s214] sm:$0x1]
    %v217 = vlaneseq
    %v218 = vshrl.u32 %v217, 7
    %v219 = vsub.s32 0, %v218
    %v220 = vrot.slane %v215, %v219
    %v226 = vunpack.c.l.b16 %v210
    %v227 = vunpack.c.l.b16 %v211
    %v228 = vunpack.c.l.b16 %v212
    %v229 = vunpack.c.l.b16 %v213
    %v230 = vpack.c.b16 %v227, %v226
    %v231 = vpack.c.b16 %v229, %v228
    %v235 = vsel %vm163, %v208, 0
    %237 = vmatprep.subr.bf16.mxu0 0
    %238 = vmatpush1.bf16.msra.mxu0 %v230
    %239 = vmatprep.subr.bf16.mxu0 0
    %240 = vmatpush1.bf16.msra.mxu0 %v231
    %241 = vmatprep.subr.bf16.mxu0 0
    %242 = vmatpush1.bf16.msra.mxu0 0
    %243 = vmatprep.subr.bf16.mxu0 0
    %244 = vmatpush1.bf16.msra.mxu0 0
    %245 = vmatprep.subr.bf16.mxu0 0
    %246 = vmatpush1.bf16.msra.mxu0 0
    %247 = vmatprep.subr.bf16.mxu0 0
    %248 = vmatpush1.bf16.msra.mxu0 0
    %249 = vmatprep.subr.bf16.mxu0 0
    %250 = vmatpush1.bf16.msra.mxu0 0
    %251 = vmatprep.subr.bf16.mxu0 0
    %252 = vmatpush1.bf16.msra.mxu0 0
    %253 = vmatprep.subr.bf16.mxu0 0
    %254 = vmatpush1.bf16.msra.mxu0 0
    %255 = vmatprep.subr.bf16.mxu0 0
    %256 = vmatpush1.bf16.msra.mxu0 0
    %257 = vmatprep.subr.bf16.mxu0 0
    %258 = vmatpush1.bf16.msra.mxu0 0
    %259 = vmatprep.subr.bf16.mxu0 0
    %260 = vmatpush1.bf16.msra.mxu0 0
    %261 = vmatprep.subr.bf16.mxu0 0
    %262 = vmatpush1.bf16.msra.mxu0 0
    %263 = vmatprep.subr.bf16.mxu0 0
    %264 = vmatpush1.bf16.msra.mxu0 0
    %265 = vmatprep.subr.bf16.mxu0 0
    %266 = vmatpush1.bf16.msra.mxu0 0
    %267 = vmatprep.subr.bf16.mxu0 0
    %268 = vmatpush1.bf16.msra.mxu0 0
    %269 = vmatprep.mubr.bf16.mxu0 0
    %270 = vmatmul.mubr.bf16.gmra.mrb[0].mxu0 %v235
    %v271 = vpop.f32.mrb[0].mxu0
    %v272 = vadd.f32 %v220, %v271
    %v273 = vpop.f32.mrb[0].mxu0
    %v274 = vpop.f32.mrb[0].mxu0
    %v275 = vpop.f32.mrb[0].mxu0
    %276 = vdwg.mxu0
    %v277 = vmax.f32 %v272, 0.0
    %v278 = vpack.c.bf16 %v277, %v277
    %v279 = vld [vmem:[#allocation6] sm:$0xf]
    %v280 = vld [vmem:[#allocation6 + $0x4] sm:$0xf]
    %v281 = vld [vmem:[#allocation6 + $0x8] sm:$0xf]
    %v282 = vld [vmem:[#allocation6 + $0xc] sm:$0xf]
    %v283 = vld [vmem:[#allocation7] sm:$0x1]
    %v285 = vlaneseq
    %v286 = vshrl.u32 %v285, 7
    %v287 = vsub.s32 0, %v286
    %v288 = vrot.slane %v283, %v287
    %v294 = vunpack.c.l.b16 %v279
    %v295 = vunpack.c.l.b16 %v280
    %v296 = vunpack.c.l.b16 %v281
    %v297 = vunpack.c.l.b16 %v282
    %v298 = vpack.c.b16 %v295, %v294
    %v299 = vpack.c.b16 %v297, %v296
    %v303 = vsel %vm163, %v278, 0
    %305 = vmatprep.subr.bf16.mxu0 0
    %306 = vmatpush1.bf16.msra.mxu0 %v298
    %307 = vmatprep.subr.bf16.mxu0 0
    %308 = vmatpush1.bf16.msra.mxu0 %v299
    %309 = vmatprep.subr.bf16.mxu0 0
    %310 = vmatpush1.bf16.msra.mxu0 0
    %311 = vmatprep.subr.bf16.mxu0 0
    %312 = vmatpush1.bf16.msra.mxu0 0
    %313 = vmatprep.subr.bf16.mxu0 0
    %314 = vmatpush1.bf16.msra.mxu0 0
    %315 = vmatprep.subr.bf16.mxu0 0
    %316 = vmatpush1.bf16.msra.mxu0 0
    %317 = vmatprep.subr.bf16.mxu0 0
    %318 = vmatpush1.bf16.msra.mxu0 0
    %319 = vmatprep.subr.bf16.mxu0 0
    %320 = vmatpush1.bf16.msra.mxu0 0
    %321 = vmatprep.subr.bf16.mxu0 0
    %322 = vmatpush1.bf16.msra.mxu0 0
    %323 = vmatprep.subr.bf16.mxu0 0
    %324 = vmatpush1.bf16.msra.mxu0 0
    %325 = vmatprep.subr.bf16.mxu0 0
    %326 = vmatpush1.bf16.msra.mxu0 0
    %327 = vmatprep.subr.bf16.mxu0 0
    %328 = vmatpush1.bf16.msra.mxu0 0
    %329 = vmatprep.subr.bf16.mxu0 0
    %330 = vmatpush1.bf16.msra.mxu0 0
    %331 = vmatprep.subr.bf16.mxu0 0
    %332 = vmatpush1.bf16.msra.mxu0 0
    %333 = vmatprep.subr.bf16.mxu0 0
    %334 = vmatpush1.bf16.msra.mxu0 0
    %335 = vmatprep.subr.bf16.mxu0 0
    %336 = vmatpush1.bf16.msra.mxu0 0
    %337 = vmatprep.mubr.bf16.mxu0 0
    %338 = vmatmul.mubr.bf16.gmra.mrb[0].mxu0 %v303
    %v339 = vpop.f32.mrb[0].mxu0
    %v340 = vadd.f32 %v288, %v339
    %v341 = vpop.f32.mrb[0].mxu0
    %v342 = vpop.f32.mrb[0].mxu0
    %v343 = vpop.f32.mrb[0].mxu0
    %344 = vdwg.mxu0
    %v345 = vtanh.pop %v340
    %v346 = vadd.f32 %v345, 1.0
    %v347 = vmul.f32 %v346, 3.5
    %v348 = vadd.f32 %v347, -5.0
    %v349 = vlaneseq
    %v350 = vand.u32 %v349, 127
    %vm351 = vcmp.lt.s32.totalorder %v350, 4
    %v352 = vsel %vm351, %v340, %v348
    %353 = vst [vmem:[%s7] sm:$0xff] %v352
    // Predicated region
    $region46: #{actor_forward.1} parent=1 // pred_check
      _
    $region47: #{actor_forward.1} parent=1 // pred_check_branch
      %355 = sbr.rel (0) target = $region49
    $region48: #{actor_forward.1} parent=1 // pred_region
      _
    $region49: #{actor_forward.1} parent=1 // pred_fallthru
      _
    // Predicated region
    $region50: #{actor_forward.1} parent=1 // pred_check
      _
    $region51: #{actor_forward.1} parent=1 // pred_check_branch
      %357 = sbr.rel (0) target = $region53
    $region52: #{actor_forward.1} parent=1 // pred_region
      _
    $region53: #{actor_forward.1} parent=1 // pred_fallthru
      _
    %358 = vsyncpa [#allocation3], 1
    %359 = vsyncpa [#allocation5], 1
    %360 = vsyncpa [#allocation8], 1

</llo_original>
